<compile_context>
chip_gen: v7x
topology: tpu7x:2x2x1
jax: 0.10.0
libtpu: 0.0.40
codegen_flags: <defaults>
</compile_context>

<pallas_src>
import functools

import jax
import jax.numpy as jnp
from jax.experimental import pallas as pl
from jax.experimental.pallas import tpu as pltpu

_SMALL_C = 8                               # at/below this channel count, skip the MXU
_HIGHEST = jax.lax.Precision.HIGHEST       # keep f32-exact matmuls for the 1e-4 check


# ---------------------------------------------------------------------------
# Generation-aware VMEM budget
# ---------------------------------------------------------------------------
def _vmem_capacity_bytes():
    try:
        return int(pltpu.get_tpu_info().vmem_capacity_bytes)
    except Exception:
        return 0                            # unknown generation


def _default_vmem_limit(cap):
    if cap >= 96 * 1024 * 1024:             # v5e / v6e: 128 MiB physical
        return 96 * 1024 * 1024
    if cap > 0:                             # v7x: 64 MiB physical -> leave headroom
        return min(48 * 1024 * 1024, int(cap * 0.75))
    return 32 * 1024 * 1024                 # unknown: conservative, known-safe


_VMEM_CAP = _vmem_capacity_bytes()
_VMEM_LIMIT = _default_vmem_limit(_VMEM_CAP)


def _round_up(n, m):
    return -(-n // m) * m


def _pick_tile(n, cap):
    """Largest multiple of 128 that divides n and is <= cap, else n (full dim)."""
    best = None
    for cand in range(128, min(n, cap) + 1, 128):
        if n % cand == 0:
            best = cand
    return best if best is not None else n


def _pick_div_tile(n, cap, step=8):
    """Largest multiple of `step` that divides n and is <= cap, else n."""
    best = None
    for cand in range(step, max(step, min(n, cap)) + 1, step):
        if n % cand == 0:
            best = cand
    return best if best is not None else n


# ---------------------------------------------------------------------------
# Kernel 1a: spectral channel mixing, small-C path (VPU, lane-dense modes)
#   xr/xi : (B, Cin, T)   wr/wi : (Cin, Cout, T)   out : (B, Cout, T)
#   out[b,o,m] = sum_i x[b,i,m] * w[i,o,m]     (complex, split into r/i)
# ---------------------------------------------------------------------------
def _spectral_mix_vpu_kernel(xr_ref, xi_ref, wr_ref, wi_ref, or_ref, oi_ref):
    cin = xr_ref.shape[1]
    acc_r = jnp.zeros(or_ref.shape, jnp.float32)
    acc_i = jnp.zeros(oi_ref.shape, jnp.float32)
    for i in range(cin):                    # Cin <= 8 -> short static unroll
        # per-step ref indexing -> strided vector loads (no value-slice copies)
        xr_i = xr_ref[:, i:i + 1, :]        # (B, 1, T)
        xi_i = xi_ref[:, i:i + 1, :]
        wr_i = wr_ref[i:i + 1, :, :]        # (1, Cout, T)
        wi_i = wi_ref[i:i + 1, :, :]
        acc_r = acc_r + xr_i * wr_i - xi_i * wi_i
        acc_i = acc_i + xr_i * wi_i + xi_i * wr_i
    or_ref[...] = acc_r
    oi_ref[...] = acc_i


def _spectral_mix_vpu(xr, xi, wr, wi):
    """xr/xi: (B, Cin, Mp); wr/wi: (Cin, Cout, Mp); Mp multiple of 128."""
    B, Cin, Mp = xr.shape
    Cout = wr.shape[1]
    # channel/VMEM-aware mode tile; try to keep >=4 grid steps for v7x dual-TC
    per_mode = 4 * 2 * (B * Cin + Cin * Cout + B * Cout)
    budget = max(1, int(_VMEM_LIMIT * 0.6))
    mem_cap = max(128, (budget // (2 * per_mode)) // 128 * 128)
    cap = min(512, max(128, Mp // 4), mem_cap)
    T = _pick_tile(Mp, cap)
    cost = pl.CostEstimate(
        flops=8 * B * Cin * Cout * Mp,
        transcendentals=0,
        bytes_accessed=4 * 2 * (B * Cin * Mp + Cin * Cout * Mp + B * Cout * Mp))
    return pl.pallas_call(
        _spectral_mix_vpu_kernel,
        out_shape=(jax.ShapeDtypeStruct((B, Cout, Mp), jnp.float32),
                   jax.ShapeDtypeStruct((B, Cout, Mp), jnp.float32)),
        grid=(Mp // T,),
        in_specs=[
            pl.BlockSpec((B, Cin, T), lambda j: (0, 0, j)),
            pl.BlockSpec((B, Cin, T), lambda j: (0, 0, j)),
            pl.BlockSpec((Cin, Cout, T), lambda j: (0, 0, j)),
            pl.BlockSpec((Cin, Cout, T), lambda j: (0, 0, j)),
        ],
        out_specs=(
            pl.BlockSpec((B, Cout, T), lambda j: (0, 0, j)),
            pl.BlockSpec((B, Cout, T), lambda j: (0, 0, j)),
        ),
        compiler_params=pltpu.CompilerParams(
            dimension_semantics=("parallel",), vmem_limit_bytes=_VMEM_LIMIT),
        cost_estimate=cost,
    )(xr, xi, wr, wi)


# ---------------------------------------------------------------------------
# Kernel 1b: spectral channel mixing, large-C path (MXU, single stacked matmul)
#   x_stack : (T, 2B, Cin)   rows [0:B] = real, [B:2B] = imag
#   w_stack : (T, Cin, 2Cout) cols [0:Cout] = real, [Cout:2Cout] = imag
#   res = x_stack @ w_stack -> (T, 2B, 2Cout); or = rr - ii, oi = ri + ir
# ---------------------------------------------------------------------------
def _spectral_mix_mxu_kernel(x_ref, w_ref, or_ref, oi_ref, *, b, cout):
    res = jnp.einsum("mri,mic->mrc", x_ref[...], w_ref[...],
                     preferred_element_type=jnp.float32, precision=_HIGHEST)
    rr = res[:, :b, :cout]
    ri = res[:, :b, cout:]
    ir = res[:, b:, :cout]
    ii = res[:, b:, cout:]
    or_ref[...] = rr - ii
    oi_ref[...] = ri + ir


def _spectral_mix_mxu(x_stack, w_stack, B, Cout):
    """x_stack: (Mp, 2B, Cin); w_stack: (Mp, Cin, 2Cout); Mp multiple of 128."""
    Mp, twoB, Cin = x_stack.shape
    Cout2 = w_stack.shape[2]
    # channel/VMEM-aware mode tile (double-buffered), keep >=4 grid steps
    per_mode = 4 * (twoB * Cin + Cin * Cout2 + 2 * B * Cout)
    budget = max(1, int(_VMEM_LIMIT * 0.6))
    cap = min(max(8, budget // (2 * per_mode)), max(8, Mp // 4))
    T = _pick_div_tile(Mp, cap, step=8)
    kernel = functools.partial(_spectral_mix_mxu_kernel, b=B, cout=Cout)
    cost = pl.CostEstimate(
        flops=2 * Mp * twoB * Cin * Cout2,
        transcendentals=0,
        bytes_accessed=4 * Mp * (twoB * Cin + Cin * Cout2 + 2 * B * Cout))
    # TODO(synk): on v5e/v6e with VMEM headroom, pipeline_mode=pl.Buffered(3)
    # on the weight spec hides weight-DMA jitter; omitted here for portability.
    return pl.pallas_call(
        kernel,
        out_shape=(jax.ShapeDtypeStruct((Mp, B, Cout), jnp.float32),
                   jax.ShapeDtypeStruct((Mp, B, Cout), jnp.float32)),
        grid=(Mp // T,),
        in_specs=[
            pl.BlockSpec((T, twoB, Cin), lambda j: (j, 0, 0)),
            pl.BlockSpec((T, Cin, Cout2), lambda j: (j, 0, 0)),
        ],
        out_specs=(
            pl.BlockSpec((T, B, Cout), lambda j: (j, 0, 0)),
            pl.BlockSpec((T, B, Cout), lambda j: (j, 0, 0)),
        ),
        compiler_params=pltpu.CompilerParams(
            dimension_semantics=("parallel",), vmem_limit_bytes=_VMEM_LIMIT),
        cost_estimate=cost,
    )(x_stack, w_stack)


# ---------------------------------------------------------------------------
# Kernel 2: 1x1 conv + bias + spectral-add + ReLU, channel-major
#   out(Cout, T) = relu( W(Cout,Cin) @ x(Cin,T) + b(Cout,1) + spec(Cout,T) )
# ---------------------------------------------------------------------------
def _make_pointwise_kernel(cin, use_mxu):
    def kernel(x_ref, spec_ref, w_ref, b_ref, o_ref):
        w = w_ref[...]                       # (Cout, Cin)   resident (const index map)
        if use_mxu:
            y = jnp.dot(w, x_ref[...], preferred_element_type=jnp.float32,
                        precision=_HIGHEST)
        else:
            # tiny channel count: lane-dense VPU FMAs, x read per-channel from the ref
            y = w[:, 0:1] * x_ref[0:1, :]
            for i in range(1, cin):
                y = y + w[:, i:i + 1] * x_ref[i:i + 1, :]
        y = y + b_ref[...] + spec_ref[...]   # f32 epilogue (v5e-friendly)
        o_ref[...] = jnp.maximum(y, 0.0).astype(o_ref.dtype)
    return kernel


def _pointwise_add_relu(x_c, spec_c, w, b):
    """x_c: (B, Cin, HW), spec_c: (B, Cout, HW), w: (Cout, Cin), b: (Cout, 1)."""
    B, Cin, HW = x_c.shape
    Cout = w.shape[0]
    # generation- and channel-aware HW tile (HBM-bound kernel: bigger is better)
    hw_cap = 8192 if _VMEM_CAP >= 96 * 1024 * 1024 else 4096
    bytes_per_tok = 4 * (Cin + 2 * Cout)
    budget = max(1, int(_VMEM_LIMIT * 0.6))
    mem_cap = max(128, (budget // (2 * bytes_per_tok)) // 128 * 128)
    T = _pick_tile(HW, min(hw_cap, mem_cap))
    kernel = _make_pointwise_kernel(Cin, use_mxu=Cin > _SMALL_C)
    cost = pl.CostEstimate(
        flops=2 * B * HW * Cin * Cout + 3 * B * HW * Cout,
        transcendentals=0,
        bytes_accessed=4 * (B * Cin * HW + 2 * B * Cout * HW + Cin * Cout + Cout))
    return pl.pallas_call(
        kernel,
        out_shape=jax.ShapeDtypeStruct((B, Cout, HW), jnp.float32),
        grid=(B, HW // T),
        in_specs=[
            pl.BlockSpec((None, Cin, T), lambda b_, t: (b_, 0, t)),
            pl.BlockSpec((None, Cout, T), lambda b_, t: (b_, 0, t)),
            pl.BlockSpec((Cout, Cin), lambda b_, t: (0, 0)),
            pl.BlockSpec((Cout, 1), lambda b_, t: (0, 0)),
        ],
        out_specs=pl.BlockSpec((None, Cout, T), lambda b_, t: (b_, 0, t)),
        compiler_params=pltpu.CompilerParams(
            dimension_semantics=("parallel", "parallel"),
            vmem_limit_bytes=_VMEM_LIMIT),
        cost_estimate=cost,
    )(x_c, spec_c, w, b)


# ---------------------------------------------------------------------------
# One-time parameter prep: pack spectral weights into the kernel layout
# (concat + transpose + mode-padding happen ONCE, not per forward call).
# ---------------------------------------------------------------------------
def prepare_params(params, modes):
    m1, m2 = modes
    Cin, Cout = params["spec_w1_r"].shape[:2]
    Mm = 2 * m1 * m2
    Mm_pad = _round_up(Mm, 128)
    pad = Mm_pad - Mm
    wr = jnp.concatenate([params["spec_w1_r"], params["spec_w2_r"]],
                         axis=2).reshape(Cin, Cout, Mm)
    wi = jnp.concatenate([params["spec_w1_i"], params["spec_w2_i"]],
                         axis=2).reshape(Cin, Cout, Mm)
    if Cin <= _SMALL_C:
        # VPU layout: (Cin, Cout, Mm_pad), modes lane-dense
        spec = {"layout": "vpu",
                "wr": jnp.pad(wr, ((0, 0), (0, 0), (0, pad))),
                "wi": jnp.pad(wi, ((0, 0), (0, 0), (0, pad)))}
    else:
        # MXU layout: (Mm_pad, Cin, 2*Cout) with [wr | wi] stacked along columns
        w_stack = jnp.concatenate([jnp.transpose(wr, (2, 0, 1)),
                                   jnp.transpose(wi, (2, 0, 1))], axis=2)
        spec = {"layout": "mxu", "w": jnp.pad(w_stack, ((0, pad), (0, 0), (0, 0)))}
    return {"spec": spec,
            "w_conv": params["w_conv"].reshape(Cout, Cin),
            "b_conv": params["b_conv"].reshape(Cout, 1),
            "modes": (m1, m2), "mm": Mm, "mm_pad": Mm_pad}


# ---------------------------------------------------------------------------
# Forward wrapper (NCHW in / NCHW out)
# ---------------------------------------------------------------------------
def io_layer_forward(x, prepped):
    m1, m2 = prepped["modes"]
    Mm, Mm_pad = prepped["mm"], prepped["mm_pad"]
    pad = Mm_pad - Mm
    B, Cin, H, W = x.shape
    Cout = prepped["w_conv"].shape[0]
    x = x.astype(jnp.float32)

    # ---- spectral branch ----------------------------------------------------
    # TODO(synk): rfft2 / irfft2 have no Pallas TPU primitive; kept in plain JAX.
    x_ft = jnp.fft.rfft2(x, axes=(-2, -1))                          # (B,Cin,H,W//2+1)
    x_modes = jnp.concatenate(
        [x_ft[:, :, :m1, :m2], x_ft[:, :, H - m1:, :m2]], axis=2)   # (B,Cin,2m1,m2)

    spec = prepped["spec"]
    if spec["layout"] == "vpu":
        xr = jnp.real(x_modes).reshape(B, Cin, Mm)
        xi = jnp.imag(x_modes).reshape(B, Cin, Mm)
        if pad:
            xr = jnp.pad(xr, ((0, 0), (0, 0), (0, pad)))
            xi = jnp.pad(xi, ((0, 0), (0, 0), (0, pad)))
        out_r, out_i = _spectral_mix_vpu(xr, xi, spec["wr"], spec["wi"])
        out_r, out_i = out_r[:, :, :Mm], out_i[:, :, :Mm]           # drop mode pad
        out_modes = (out_r + 1j * out_i).astype(jnp.complex64)
        out_modes = out_modes.reshape(B, Cout, 2 * m1, m2)
    else:
        # (Mm, B, Cin) layout fused with real/imag extraction, then stack [xr;xi]
        xr_t = jnp.transpose(jnp.real(x_modes), (2, 3, 0, 1)).reshape(Mm, B, Cin)
        xi_t = jnp.transpose(jnp.imag(x_modes), (2, 3, 0, 1)).reshape(Mm, B, Cin)
        x_stack = jnp.concatenate([xr_t, xi_t], axis=1)             # (Mm, 2B, Cin)
        if pad:
            x_stack = jnp.pad(x_stack, ((0, pad), (0, 0), (0, 0)))
        out_r, out_i = _spectral_mix_mxu(x_stack, spec["w"], B, Cout)
        out_r, out_i = out_r[:Mm], out_i[:Mm]                       # (Mm, B, Cout)
        out_modes = (out_r + 1j * out_i).astype(jnp.complex64)
        out_modes = jnp.transpose(out_modes.reshape(2 * m1, m2, B, Cout), (2, 3, 0, 1))

    out_ft = jnp.zeros((B, Cout, H, W // 2 + 1), jnp.complex64)
    out_ft = out_ft.at[:, :, :m1, :m2].set(out_modes[:, :, :m1])
    out_ft = out_ft.at[:, :, H - m1:, :m2].set(out_modes[:, :, m1:])
    y_spec = jnp.fft.irfft2(out_ft, s=(H, W), axes=(-2, -1))        # (B,Cout,H,W) f32

    # ---- 1x1 conv + add + relu (channel-major, HW on the lane axis) ---------
    HW = H * W
    x_c = x.reshape(B, Cin, HW)
    s_c = y_spec.astype(jnp.float32).reshape(B, Cout, HW)
    out = _pointwise_add_relu(x_c, s_c, prepped["w_conv"], prepped["b_conv"])
    # dropout p=0.0 (inference) -> identity
    return out.reshape(B, Cout, H, W)


# ---------------------------------------------------------------------------
# Deterministic parameter init (shapes from IO_layer.__init__)
# ---------------------------------------------------------------------------
def init_params(key, features, modes):
    m1, m2 = modes
    ks = jax.random.split(key, 6)
    scale = 1.0 / (features * features)
    spec_shape = (features, features, m1, m2)
    params = {
        "spec_w1_r": scale * jax.random.uniform(ks[0], spec_shape, jnp.float32),
        "spec_w1_i": scale * jax.random.uniform(ks[1], spec_shape, jnp.float32),
        "spec_w2_r": scale * jax.random.uniform(ks[2], spec_shape, jnp.float32),
        "spec_w2_i": scale * jax.random.uniform(ks[3], spec_shape, jnp.float32),
    }
    bound = 1.0 / (features ** 0.5)
    params["w_conv"] = jax.random.uniform(
        ks[4], (features, features, 1, 1), jnp.float32, -bound, bound)
    params["b_conv"] = jax.random.uniform(
        ks[5], (features,), jnp.float32, -bound, bound)
    return params


# ---------------------------------------------------------------------------
# Pure-JAX reference (mirrors the PyTorch forward)
# ---------------------------------------------------------------------------
def reference_forward(x, params, modes):
    m1, m2 = modes
    B, Cin, H, W = x.shape
    Cout = params["w_conv"].shape[0]
    w1 = params["spec_w1_r"] + 1j * params["spec_w1_i"]
    w2 = params["spec_w2_r"] + 1j * params["spec_w2_i"]
    x_ft = jnp.fft.rfft2(x, axes=(-2, -1))
    out_ft = jnp.zeros((B, Cout, H, W // 2 + 1), jnp.complex64)
    out_ft = out_ft.at[:, :, :m1, :m2].set(
        jnp.einsum("bixy,ioxy->boxy", x_ft[:, :, :m1, :m2], w1, precision=_HIGHEST))
    out_ft = out_ft.at[:, :, H - m1:, :m2].set(
        jnp.einsum("bixy,ioxy->boxy", x_ft[:, :, H - m1:, :m2], w2, precision=_HIGHEST))
    y_spec = jnp.fft.irfft2(out_ft, s=(H, W), axes=(-2, -1))
    w = params["w_conv"][:, :, 0, 0]
    y_pw = (jnp.einsum("bihw,oi->bohw", x, w, precision=_HIGHEST)
            + params["b_conv"][None, :, None, None])
    return jax.nn.relu(y_spec + y_pw)


if __name__ == "__main__":
    key = jax.random.PRNGKey(0)
    # case 1 exercises the small-C VPU paths; case 2 exercises the MXU paths
    for (B, C, H, W, modes) in [(2, 4, 16, 16, (4, 4)),
                                (2, 16, 16, 16, (4, 4))]:
        k_x, k_p, key = jax.random.split(key, 3)
        x = jax.random.normal(k_x, (B, C, H, W), jnp.float32)
        params = init_params(k_p, C, modes)
        prepped = prepare_params(params, modes)     # one-time weight prepack

        out = jax.block_until_ready(io_layer_forward(x, prepped))
        ref = reference_forward(x, params, modes)
        assert out.shape == (B, C, H, W)
        max_err = float(jnp.max(jnp.abs(out - ref)))
        assert jnp.allclose(out, ref, rtol=1e-4, atol=1e-4), (C, max_err)

    print("KERNEL_OK")
</pallas_src>

<mosaic_0001>
module attributes {stable_mosaic.version = 11 : i64} {
  func.func @_spectral_mix_vpu_kernel(%arg0: i32, %arg1: memref<2x4x128xf32, #tpu.memory_space<vmem>>, %arg2: memref<2x4x128xf32, #tpu.memory_space<vmem>>, %arg3: memref<4x4x128xf32, #tpu.memory_space<vmem>>, %arg4: memref<4x4x128xf32, #tpu.memory_space<vmem>>, %arg5: memref<2x4x128xf32, #tpu.memory_space<vmem>>, %arg6: memref<2x4x128xf32, #tpu.memory_space<vmem>>) attributes {dimension_semantics = [#tpu.dimension_semantics<parallel>], iteration_bounds = array<i64: 1>, scalar_prefetch = 0 : i64, scratch_operands = 0 : i64, tpu.core_type = #tpu.core_type<tc>, window_params = [{transform_indices = @transform_0, window_bounds = array<i64: 2, 4, 128>}, {transform_indices = @transform_1, window_bounds = array<i64: 2, 4, 128>}, {transform_indices = @transform_2, window_bounds = array<i64: 4, 4, 128>}, {transform_indices = @transform_3, window_bounds = array<i64: 4, 4, 128>}, {transform_indices = @transform_4, window_bounds = array<i64: 2, 4, 128>}, {transform_indices = @transform_5, window_bounds = array<i64: 2, 4, 128>}]} {
    %cst = arith.constant 0.000000e+00 : f32
    %0 = vector.broadcast %cst : f32 to vector<2x4x128xf32>
    %cst_0 = arith.constant 0.000000e+00 : f32
    %1 = vector.broadcast %cst_0 : f32 to vector<2x4x128xf32>
    %c0 = arith.constant 0 : index
    %c0_1 = arith.constant 0 : index
    %c0_2 = arith.constant 0 : index
    %2 = vector.load %arg1[%c0, %c0_1, %c0_2] : memref<2x4x128xf32, #tpu.memory_space<vmem>>, vector<2x1x128xf32>
    %c0_3 = arith.constant 0 : index
    %c0_4 = arith.constant 0 : index
    %c0_5 = arith.constant 0 : index
    %3 = vector.load %arg2[%c0_3, %c0_4, %c0_5] : memref<2x4x128xf32, #tpu.memory_space<vmem>>, vector<2x1x128xf32>
    %c0_6 = arith.constant 0 : index
    %c0_7 = arith.constant 0 : index
    %c0_8 = arith.constant 0 : index
    %4 = vector.load %arg3[%c0_6, %c0_7, %c0_8] : memref<4x4x128xf32, #tpu.memory_space<vmem>>, vector<1x4x128xf32>
    %c0_9 = arith.constant 0 : index
    %c0_10 = arith.constant 0 : index
    %c0_11 = arith.constant 0 : index
    %5 = vector.load %arg4[%c0_9, %c0_10, %c0_11] : memref<4x4x128xf32, #tpu.memory_space<vmem>>, vector<1x4x128xf32>
    %6 = vector.broadcast %2 : vector<2x1x128xf32> to vector<2x4x128xf32>
    %7 = vector.broadcast %4 : vector<1x4x128xf32> to vector<2x4x128xf32>
    %8 = arith.mulf %6, %7 : vector<2x4x128xf32>
    %9 = arith.addf %0, %8 : vector<2x4x128xf32>
    %10 = vector.broadcast %3 : vector<2x1x128xf32> to vector<2x4x128xf32>
    %11 = vector.broadcast %5 : vector<1x4x128xf32> to vector<2x4x128xf32>
    %12 = arith.mulf %10, %11 : vector<2x4x128xf32>
    %13 = arith.subf %9, %12 : vector<2x4x128xf32>
    %14 = vector.broadcast %2 : vector<2x1x128xf32> to vector<2x4x128xf32>
    %15 = vector.broadcast %5 : vector<1x4x128xf32> to vector<2x4x128xf32>
    %16 = arith.mulf %14, %15 : vector<2x4x128xf32>
    %17 = arith.addf %1, %16 : vector<2x4x128xf32>
    %18 = vector.broadcast %3 : vector<2x1x128xf32> to vector<2x4x128xf32>
    %19 = vector.broadcast %4 : vector<1x4x128xf32> to vector<2x4x128xf32>
    %20 = arith.mulf %18, %19 : vector<2x4x128xf32>
    %21 = arith.addf %17, %20 : vector<2x4x128xf32>
    %c0_12 = arith.constant 0 : index
    %c1 = arith.constant 1 : index
    %c0_13 = arith.constant 0 : index
    %22 = vector.load %arg1[%c0_12, %c1, %c0_13] : memref<2x4x128xf32, #tpu.memory_space<vmem>>, vector<2x1x128xf32>
    %c0_14 = arith.constant 0 : index
    %c1_15 = arith.constant 1 : index
    %c0_16 = arith.constant 0 : index
    %23 = vector.load %arg2[%c0_14, %c1_15, %c0_16] : memref<2x4x128xf32, #tpu.memory_space<vmem>>, vector<2x1x128xf32>
    %c1_17 = arith.constant 1 : index
    %c0_18 = arith.constant 0 : index
    %c0_19 = arith.constant 0 : index
    %24 = vector.load %arg3[%c1_17, %c0_18, %c0_19] : memref<4x4x128xf32, #tpu.memory_space<vmem>>, vector<1x4x128xf32>
    %c1_20 = arith.constant 1 : index
    %c0_21 = arith.constant 0 : index
    %c0_22 = arith.constant 0 : index
    %25 = vector.load %arg4[%c1_20, %c0_21, %c0_22] : memref<4x4x128xf32, #tpu.memory_space<vmem>>, vector<1x4x128xf32>
    %26 = vector.broadcast %22 : vector<2x1x128xf32> to vector<2x4x128xf32>
    %27 = vector.broadcast %24 : vector<1x4x128xf32> to vector<2x4x128xf32>
    %28 = arith.mulf %26, %27 : vector<2x4x128xf32>
    %29 = arith.addf %13, %28 : vector<2x4x128xf32>
    %30 = vector.broadcast %23 : vector<2x1x128xf32> to vector<2x4x128xf32>
    %31 = vector.broadcast %25 : vector<1x4x128xf32> to vector<2x4x128xf32>
    %32 = arith.mulf %30, %31 : vector<2x4x128xf32>
    %33 = arith.subf %29, %32 : vector<2x4x128xf32>
    %34 = vector.broadcast %22 : vector<2x1x128xf32> to vector<2x4x128xf32>
    %35 = vector.broadcast %25 : vector<1x4x128xf32> to vector<2x4x128xf32>
    %36 = arith.mulf %34, %35 : vector<2x4x128xf32>
    %37 = arith.addf %21, %36 : vector<2x4x128xf32>
    %38 = vector.broadcast %23 : vector<2x1x128xf32> to vector<2x4x128xf32>
    %39 = vector.broadcast %24 : vector<1x4x128xf32> to vector<2x4x128xf32>
    %40 = arith.mulf %38, %39 : vector<2x4x128xf32>
    %41 = arith.addf %37, %40 : vector<2x4x128xf32>
    %c0_23 = arith.constant 0 : index
    %c2 = arith.constant 2 : index
    %c0_24 = arith.constant 0 : index
    %42 = vector.load %arg1[%c0_23, %c2, %c0_24] : memref<2x4x128xf32, #tpu.memory_space<vmem>>, vector<2x1x128xf32>
    %c0_25 = arith.constant 0 : index
    %c2_26 = arith.constant 2 : index
    %c0_27 = arith.constant 0 : index
    %43 = vector.load %arg2[%c0_25, %c2_26, %c0_27] : memref<2x4x128xf32, #tpu.memory_space<vmem>>, vector<2x1x128xf32>
    %c2_28 = arith.constant 2 : index
    %c0_29 = arith.constant 0 : index
    %c0_30 = arith.constant 0 : index
    %44 = vector.load %arg3[%c2_28, %c0_29, %c0_30] : memref<4x4x128xf32, #tpu.memory_space<vmem>>, vector<1x4x128xf32>
    %c2_31 = arith.constant 2 : index
    %c0_32 = arith.constant 0 : index
    %c0_33 = arith.constant 0 : index
    %45 = vector.load %arg4[%c2_31, %c0_32, %c0_33] : memref<4x4x128xf32, #tpu.memory_space<vmem>>, vector<1x4x128xf32>
    %46 = vector.broadcast %42 : vector<2x1x128xf32> to vector<2x4x128xf32>
    %47 = vector.broadcast %44 : vector<1x4x128xf32> to vector<2x4x128xf32>
    %48 = arith.mulf %46, %47 : vector<2x4x128xf32>
    %49 = arith.addf %33, %48 : vector<2x4x128xf32>
    %50 = vector.broadcast %43 : vector<2x1x128xf32> to vector<2x4x128xf32>
    %51 = vector.broadcast %45 : vector<1x4x128xf32> to vector<2x4x128xf32>
    %52 = arith.mulf %50, %51 : vector<2x4x128xf32>
    %53 = arith.subf %49, %52 : vector<2x4x128xf32>
    %54 = vector.broadcast %42 : vector<2x1x128xf32> to vector<2x4x128xf32>
    %55 = vector.broadcast %45 : vector<1x4x128xf32> to vector<2x4x128xf32>
    %56 = arith.mulf %54, %55 : vector<2x4x128xf32>
    %57 = arith.addf %41, %56 : vector<2x4x128xf32>
    %58 = vector.broadcast %43 : vector<2x1x128xf32> to vector<2x4x128xf32>
    %59 = vector.broadcast %44 : vector<1x4x128xf32> to vector<2x4x128xf32>
    %60 = arith.mulf %58, %59 : vector<2x4x128xf32>
    %61 = arith.addf %57, %60 : vector<2x4x128xf32>
    %c0_34 = arith.constant 0 : index
    %c3 = arith.constant 3 : index
    %c0_35 = arith.constant 0 : index
    %62 = vector.load %arg1[%c0_34, %c3, %c0_35] : memref<2x4x128xf32, #tpu.memory_space<vmem>>, vector<2x1x128xf32>
    %c0_36 = arith.constant 0 : index
    %c3_37 = arith.constant 3 : index
    %c0_38 = arith.constant 0 : index
    %63 = vector.load %arg2[%c0_36, %c3_37, %c0_38] : memref<2x4x128xf32, #tpu.memory_space<vmem>>, vector<2x1x128xf32>
    %c3_39 = arith.constant 3 : index
    %c0_40 = arith.constant 0 : index
    %c0_41 = arith.constant 0 : index
    %64 = vector.load %arg3[%c3_39, %c0_40, %c0_41] : memref<4x4x128xf32, #tpu.memory_space<vmem>>, vector<1x4x128xf32>
    %c3_42 = arith.constant 3 : index
    %c0_43 = arith.constant 0 : index
    %c0_44 = arith.constant 0 : index
    %65 = vector.load %arg4[%c3_42, %c0_43, %c0_44] : memref<4x4x128xf32, #tpu.memory_space<vmem>>, vector<1x4x128xf32>
    %66 = vector.broadcast %62 : vector<2x1x128xf32> to vector<2x4x128xf32>
    %67 = vector.broadcast %64 : vector<1x4x128xf32> to vector<2x4x128xf32>
    %68 = arith.mulf %66, %67 : vector<2x4x128xf32>
    %69 = arith.addf %53, %68 : vector<2x4x128xf32>
    %70 = vector.broadcast %63 : vector<2x1x128xf32> to vector<2x4x128xf32>
    %71 = vector.broadcast %65 : vector<1x4x128xf32> to vector<2x4x128xf32>
    %72 = arith.mulf %70, %71 : vector<2x4x128xf32>
    %73 = arith.subf %69, %72 : vector<2x4x128xf32>
    %74 = vector.broadcast %62 : vector<2x1x128xf32> to vector<2x4x128xf32>
    %75 = vector.broadcast %65 : vector<1x4x128xf32> to vector<2x4x128xf32>
    %76 = arith.mulf %74, %75 : vector<2x4x128xf32>
    %77 = arith.addf %61, %76 : vector<2x4x128xf32>
    %78 = vector.broadcast %63 : vector<2x1x128xf32> to vector<2x4x128xf32>
    %79 = vector.broadcast %64 : vector<1x4x128xf32> to vector<2x4x128xf32>
    %80 = arith.mulf %78, %79 : vector<2x4x128xf32>
    %81 = arith.addf %77, %80 : vector<2x4x128xf32>
    %c0_45 = arith.constant 0 : index
    %c0_46 = arith.constant 0 : index
    %c0_47 = arith.constant 0 : index
    %82 = vector.load %arg5[%c0_45, %c0_46, %c0_47] : memref<2x4x128xf32, #tpu.memory_space<vmem>>, vector<2x4x128xf32>
    tpu.vector_store %arg5[%c0_45, %c0_46, %c0_47], %73 {strides = array<i32>} : memref<2x4x128xf32, #tpu.memory_space<vmem>>, vector<2x4x128xf32>,
    %c0_48 = arith.constant 0 : index
    %c0_49 = arith.constant 0 : index
    %c0_50 = arith.constant 0 : index
    %83 = vector.load %arg6[%c0_48, %c0_49, %c0_50] : memref<2x4x128xf32, #tpu.memory_space<vmem>>, vector<2x4x128xf32>
    tpu.vector_store %arg6[%c0_48, %c0_49, %c0_50], %81 {strides = array<i32>} : memref<2x4x128xf32, #tpu.memory_space<vmem>>, vector<2x4x128xf32>,
    return
  }
  func.func @transform_0(%arg0: i32) -> (i32, i32, i32) {
    %c0_i32 = arith.constant 0 : i32
    %c0_i32_0 = arith.constant 0 : i32
    %c0_i32_1 = arith.constant 0 : i32
    return %c0_i32, %c0_i32_0, %arg0 : i32, i32, i32
  }
  func.func @transform_1(%arg0: i32) -> (i32, i32, i32) {
    %c0_i32 = arith.constant 0 : i32
    %c0_i32_0 = arith.constant 0 : i32
    %c0_i32_1 = arith.constant 0 : i32
    return %c0_i32, %c0_i32_0, %arg0 : i32, i32, i32
  }
  func.func @transform_2(%arg0: i32) -> (i32, i32, i32) {
    %c0_i32 = arith.constant 0 : i32
    %c0_i32_0 = arith.constant 0 : i32
    %c0_i32_1 = arith.constant 0 : i32
    return %c0_i32, %c0_i32_0, %arg0 : i32, i32, i32
  }
  func.func @transform_3(%arg0: i32) -> (i32, i32, i32) {
    %c0_i32 = arith.constant 0 : i32
    %c0_i32_0 = arith.constant 0 : i32
    %c0_i32_1 = arith.constant 0 : i32
    return %c0_i32, %c0_i32_0, %arg0 : i32, i32, i32
  }
  func.func @transform_4(%arg0: i32) -> (i32, i32, i32) {
    %c0_i32 = arith.constant 0 : i32
    %c0_i32_0 = arith.constant 0 : i32
    %c0_i32_1 = arith.constant 0 : i32
    return %c0_i32, %c0_i32_0, %arg0 : i32, i32, i32
  }
  func.func @transform_5(%arg0: i32) -> (i32, i32, i32) {
    %c0_i32 = arith.constant 0 : i32
    %c0_i32_0 = arith.constant 0 : i32
    %c0_i32_1 = arith.constant 0 : i32
    return %c0_i32, %c0_i32_0, %arg0 : i32, i32, i32
  }
}

</mosaic_0001>

<llo_original>
// kernel: tpu_custom_call.1
$region0: #{tpu_custom_call.1}
  #allocation0 [shape = 'u32[]', space=smem, size = 0x4, offset = 0x4, fixed_abs, tag = 'smem constant byte address 0x4 - core index']
  #allocation1 [shape = 'u32[144,128]{1,0:T(1,128)}', space=vmem, size = 0x12000, scoped, tag = 'internal scratch']
  %s0 = inlined_call_operand.hbm [shape: f32[2,4,128], index: 0, kind: input, shape index: {}]
  %s1 = inlined_call_operand.hbm [shape: f32[2,4,128], index: 1, kind: input, shape index: {}]
  %s2 = inlined_call_operand.hbm [shape: f32[4,4,128], index: 2, kind: input, shape index: {}]
  %s3 = inlined_call_operand.hbm [shape: f32[4,4,128], index: 3, kind: input, shape index: {}]
  %s4 = inlined_call_operand.hbm [shape: f32[2,4,128], index: 4, kind: output, shape index: {0}]
  %s5 = inlined_call_operand.hbm [shape: f32[2,4,128], index: 5, kind: output, shape index: {1}]
  %6 = xla_tuple %s4, %s5
  %s7 = sld [smem:[#allocation0]]
  $region50: #{tpu_custom_call.1} parent=0
    _
  %s9 = ssub.s32 1, %s7
  %s10 = scalar_select 0, %s9, %s7
  $region1: #{tpu_custom_call.1} parent=0
    #allocation2 [shape = 'u8[4096]{0}', space=vmem, size = 0x1000, scoped, tag = 'input window, operand 0, single buffered']
    #allocation3 [shape = 's32[1]{0}', space=sflag, size = 0x4, scoped, tag = 'scoped memory for tpu_custom_call.1']
    #allocation4 [shape = 's32[1]{0}', space=sflag, size = 0x4, scoped, tag = 'scoped memory for tpu_custom_call.1']
    #allocation5 [shape = 'u8[4096]{0}', space=vmem, size = 0x1000, scoped, tag = 'input window, operand 1, single buffered']
    #allocation6 [shape = 's32[1]{0}', space=sflag, size = 0x4, scoped, tag = 'scoped memory for tpu_custom_call.1']
    #allocation7 [shape = 'u8[8192]{0}', space=vmem, size = 0x2000, scoped, tag = 'input window, operand 2, single buffered']
    #allocation8 [shape = 'u8[8192]{0}', space=vmem, size = 0x2000, scoped, tag = 'input window, operand 3, single buffered']
    #allocation9 [shape = 's32[1]{0}', space=sflag, size = 0x4, scoped, tag = 'scoped memory for tpu_custom_call.1']
    #allocation10 [shape = 'u8[4096]{0}', space=vmem, size = 0x1000, scoped, tag = 'output window, operand 0, single buffered']
    #allocation11 [shape = 'u8[4096]{0}', space=vmem, size = 0x1000, scoped, tag = 'output window, operand 1, single buffered']
    #allocation12 [shape = 's32[1]{0}', space=sflag, size = 0x4, scoped, tag = 'scoped memory for tpu_custom_call.1']
    %11 = vsyncpa [#allocation3], 0
    %12 = vsyncpa [#allocation6], 0
    %13 = vsyncpa [#allocation9], 0
    %14 = vsyncpa [#allocation4], 0
    %15 = vsyncpa [#allocation12], 0
    // Predicated region
    $region2: #{tpu_custom_call.1} parent=1 // pred_check
      _
    $region3: #{tpu_custom_call.1} parent=1 // pred_check_branch
      %17 = sbr.rel (0) target = $region5
    $region4: #{tpu_custom_call.1} parent=1 // pred_region
      %s19 = ssub.s32 128, 128
      %20 = vsyncadd [#allocation3], %s19
      %s21 = sshll.u32 [#allocation2], 4
      %s22 = int_to_ptr.vmem [resolvable:$true] %s21
      %27 = dma.hbm_to_vmem [thread:$0]  %s0, 128, %s22, [#allocation3], 64, 64, 4
    $region5: #{tpu_custom_call.1} parent=1 // pred_fallthru
      _
    // Predicated region
    $region6: #{tpu_custom_call.1} parent=1 // pred_check
      _
    $region7: #{tpu_custom_call.1} parent=1 // pred_check_branch
      %29 = sbr.rel (0) target = $region9
    $region8: #{tpu_custom_call.1} parent=1 // pred_region
      %s31 = ssub.s32 128, 128
      %32 = vsyncadd [#allocation6], %s31
      %s33 = sshll.u32 [#allocation5], 4
      %s34 = int_to_ptr.vmem [resolvable:$true] %s33
      %39 = dma.hbm_to_vmem [thread:$0]  %s1, 128, %s34, [#allocation6], 64, 64, 4
    $region9: #{tpu_custom_call.1} parent=1 // pred_fallthru
      _
    // Predicated region
    $region10: #{tpu_custom_call.1} parent=1 // pred_check
      _
    $region11: #{tpu_custom_call.1} parent=1 // pred_check_branch
      %41 = sbr.rel (0) target = $region13
    $region12: #{tpu_custom_call.1} parent=1 // pred_region
      %s43 = ssub.s32 256, 256
      %44 = vsyncadd [#allocation6], %s43
      %s45 = sshll.u32 [#allocation7], 4
      %s46 = int_to_ptr.vmem [resolvable:$true] %s45
      %51 = dma.hbm_to_vmem [thread:$0]  %s2, 256, %s46, [#allocation6], 64, 64, 4
    $region13: #{tpu_custom_call.1} parent=1 // pred_fallthru
      _
    // Predicated region
    $region14: #{tpu_custom_call.1} parent=1 // pred_check
      _
    $region15: #{tpu_custom_call.1} parent=1 // pred_check_branch
      %53 = sbr.rel (0) target = $region17
    $region16: #{tpu_custom_call.1} parent=1 // pred_region
      %s55 = ssub.s32 256, 256
      %56 = vsyncadd [#allocation9], %s55
      %s57 = sshll.u32 [#allocation8], 4
      %s58 = int_to_ptr.vmem [resolvable:$true] %s57
      %63 = dma.hbm_to_vmem [thread:$0]  %s3, 256, %s58, [#allocation9], 64, 64, 4
    $region17: #{tpu_custom_call.1} parent=1 // pred_fallthru
      _
    // Predicated region
    $region18: #{tpu_custom_call.1} parent=1 // pred_check
      _
    $region19: #{tpu_custom_call.1} parent=1 // pred_check_branch
      %65 = sbr.rel (0) target = $region21
    $region20: #{tpu_custom_call.1} parent=1 // pred_region
      %66 = dma.done [#allocation3], 128
    $region21: #{tpu_custom_call.1} parent=1 // pred_fallthru
      _
    // Predicated region
    $region22: #{tpu_custom_call.1} parent=1 // pred_check
      _
    $region23: #{tpu_custom_call.1} parent=1 // pred_check_branch
      %68 = sbr.rel (0) target = $region25
    $region24: #{tpu_custom_call.1} parent=1 // pred_region
      %69 = dma.done [#allocation6], 128
    $region25: #{tpu_custom_call.1} parent=1 // pred_fallthru
      _
    // Predicated region
    $region26: #{tpu_custom_call.1} parent=1 // pred_check
      _
    $region27: #{tpu_custom_call.1} parent=1 // pred_check_branch
      %71 = sbr.rel (0) target = $region29
    $region28: #{tpu_custom_call.1} parent=1 // pred_region
      %72 = dma.done [#allocation6], 256
    $region29: #{tpu_custom_call.1} parent=1 // pred_fallthru
      _
    // Predicated region
    $region30: #{tpu_custom_call.1} parent=1 // pred_check
      _
    $region31: #{tpu_custom_call.1} parent=1 // pred_check_branch
      %74 = sbr.rel (0) target = $region33
    $region32: #{tpu_custom_call.1} parent=1 // pred_region
      %75 = dma.done [#allocation9], 256
    $region33: #{tpu_custom_call.1} parent=1 // pred_fallthru
      _
    %v76 = vld [vmem:[#allocation2] sm:$0x1]
    %v77 = vld [vmem:[#allocation2 + $0x4] sm:$0x1]
    %v78 = vld [vmem:[#allocation5] sm:$0x1]
    %v79 = vld [vmem:[#allocation5 + $0x4] sm:$0x1]
    %v80 = vld [vmem:[#allocation7] sm:$0xf]
    %v81 = vld [vmem:[#allocation8] sm:$0xf]
    %v82 = vlaneseq
    %v83 = vshrl.u32 %v82, 7
    %v84 = vsub.s32 0, %v83
    %v85 = vrot.slane %v76, %v84
    %v86 = vlaneseq
    %v87 = vshrl.u32 %v86, 7
    %v88 = vsub.s32 0, %v87
    %v89 = vrot.slane %v77, %v88
    %v90 = vmul.f32 %v85, %v80
    %v91 = vmul.f32 %v89, %v80
    %v92 = vadd.f32 %v90, 0.0
    %v93 = vadd.f32 %v91, 0.0
    %v94 = vlaneseq
    %v95 = vshrl.u32 %v94, 7
    %v96 = vsub.s32 0, %v95
    %v97 = vrot.slane %v78, %v96
    %v98 = vlaneseq
    %v99 = vshrl.u32 %v98, 7
    %v100 = vsub.s32 0, %v99
    %v101 = vrot.slane %v79, %v100
    %v102 = vmul.f32 %v97, %v81
    %v103 = vmul.f32 %v101, %v81
    %v104 = vsub.f32 %v92, %v102
    %v105 = vsub.f32 %v93, %v103
    %v106 = vmul.f32 %v85, %v81
    %v107 = vmul.f32 %v89, %v81
    %v108 = vadd.f32 %v106, 0.0
    %v109 = vadd.f32 %v107, 0.0
    %v110 = vmul.f32 %v97, %v80
    %v111 = vmul.f32 %v101, %v80
    %v112 = vadd.f32 %v108, %v110
    %v113 = vadd.f32 %v109, %v111
    %v114 = vld [vmem:[#allocation2 + $0x1] sm:$0x1]
    %v115 = vld [vmem:[#allocation2 + $0x5] sm:$0x1]
    %v116 = vld [vmem:[#allocation5 + $0x1] sm:$0x1]
    %v117 = vld [vmem:[#allocation5 + $0x5] sm:$0x1]
    %s118 = scalar_lea.vmem [#allocation7], 4
    %v119 = vld [vmem:[%s118] sm:$0xf]
    %s120 = scalar_lea.vmem [#allocation8], 4
    %v121 = vld [vmem:[%s120] sm:$0xf]
    %v122 = vlaneseq
    %v123 = vshrl.u32 %v122, 7
    %v124 = vsub.s32 0, %v123
    %v125 = vrot.slane %v114, %v124
    %v126 = vlaneseq
    %v127 = vshrl.u32 %v126, 7
    %v128 = vsub.s32 0, %v127
    %v129 = vrot.slane %v115, %v128
    %v130 = vmul.f32 %v125, %v119
    %v131 = vmul.f32 %v129, %v119
    %v132 = vadd.f32 %v104, %v130
    %v133 = vadd.f32 %v105, %v131
    %v134 = vlaneseq
    %v135 = vshrl.u32 %v134, 7
    %v136 = vsub.s32 0, %v135
    %v137 = vrot.slane %v116, %v136
    %v138 = vlaneseq
    %v139 = vshrl.u32 %v138, 7
    %v140 = vsub.s32 0, %v139
    %v141 = vrot.slane %v117, %v140
    %v142 = vmul.f32 %v137, %v121
    %v143 = vmul.f32 %v141, %v121
    %v144 = vsub.f32 %v132, %v142
    %v145 = vsub.f32 %v133, %v143
    %v146 = vmul.f32 %v125, %v121
    %v147 = vmul.f32 %v129, %v121
    %v148 = vadd.f32 %v112, %v146
    %v149 = vadd.f32 %v113, %v147
    %v150 = vmul.f32 %v137, %v119
    %v151 = vmul.f32 %v141, %v119
    %v152 = vadd.f32 %v148, %v150
    %v153 = vadd.f32 %v149, %v151
    %v154 = vld [vmem:[#allocation2 + $0x2] sm:$0x1]
    %v155 = vld [vmem:[#allocation2 + $0x6] sm:$0x1]
    %v156 = vld [vmem:[#allocation5 + $0x2] sm:$0x1]
    %v157 = vld [vmem:[#allocation5 + $0x6] sm:$0x1]
    %s158 = scalar_lea.vmem [#allocation7], 8
    %v159 = vld [vmem:[%s158] sm:$0xf]
    %s160 = scalar_lea.vmem [#allocation8], 8
    %v161 = vld [vmem:[%s160] sm:$0xf]
    %v162 = vlaneseq
    %v163 = vshrl.u32 %v162, 7
    %v164 = vsub.s32 0, %v163
    %v165 = vrot.slane %v154, %v164
    %v166 = vlaneseq
    %v167 = vshrl.u32 %v166, 7
    %v168 = vsub.s32 0, %v167
    %v169 = vrot.slane %v155, %v168
    %v170 = vmul.f32 %v165, %v159
    %v171 = vmul.f32 %v169, %v159
    %v172 = vadd.f32 %v144, %v170
    %v173 = vadd.f32 %v145, %v171
    %v174 = vlaneseq
    %v175 = vshrl.u32 %v174, 7
    %v176 = vsub.s32 0, %v175
    %v177 = vrot.slane %v156, %v176
    %v178 = vlaneseq
    %v179 = vshrl.u32 %v178, 7
    %v180 = vsub.s32 0, %v179
    %v181 = vrot.slane %v157, %v180
    %v182 = vmul.f32 %v177, %v161
    %v183 = vmul.f32 %v181, %v161
    %v184 = vsub.f32 %v172, %v182
    %v185 = vsub.f32 %v173, %v183
    %v186 = vmul.f32 %v165, %v161
    %v187 = vmul.f32 %v169, %v161
    %v188 = vadd.f32 %v152, %v186
    %v189 = vadd.f32 %v153, %v187
    %v190 = vmul.f32 %v177, %v159
    %v191 = vmul.f32 %v181, %v159
    %v192 = vadd.f32 %v188, %v190
    %v193 = vadd.f32 %v189, %v191
    %v194 = vld [vmem:[#allocation2 + $0x3] sm:$0x1]
    %v195 = vld [vmem:[#allocation2 + $0x7] sm:$0x1]
    %v196 = vld [vmem:[#allocation5 + $0x3] sm:$0x1]
    %v197 = vld [vmem:[#allocation5 + $0x7] sm:$0x1]
    %s198 = scalar_lea.vmem [#allocation7], 12
    %v199 = vld [vmem:[%s198] sm:$0xf]
    %s200 = scalar_lea.vmem [#allocation8], 12
    %v201 = vld [vmem:[%s200] sm:$0xf]
    %v202 = vlaneseq
    %v203 = vshrl.u32 %v202, 7
    %v204 = vsub.s32 0, %v203
    %v205 = vrot.slane %v194, %v204
    %v206 = vlaneseq
    %v207 = vshrl.u32 %v206, 7
    %v208 = vsub.s32 0, %v207
    %v209 = vrot.slane %v195, %v208
    %v210 = vmul.f32 %v205, %v199
    %v211 = vmul.f32 %v209, %v199
    %v212 = vadd.f32 %v184, %v210
    %v213 = vadd.f32 %v185, %v211
    %v214 = vlaneseq
    %v215 = vshrl.u32 %v214, 7
    %v216 = vsub.s32 0, %v215
    %v217 = vrot.slane %v196, %v216
    %v218 = vlaneseq
    %v219 = vshrl.u32 %v218, 7
    %v220 = vsub.s32 0, %v219
    %v221 = vrot.slane %v197, %v220
    %v222 = vmul.f32 %v217, %v201
    %v223 = vmul.f32 %v221, %v201
    %v224 = vsub.f32 %v212, %v222
    %v225 = vsub.f32 %v213, %v223
    %v226 = vmul.f32 %v205, %v201
    %v227 = vmul.f32 %v209, %v201
    %v228 = vadd.f32 %v192, %v226
    %v229 = vadd.f32 %v193, %v227
    %v230 = vmul.f32 %v217, %v199
    %v231 = vmul.f32 %v221, %v199
    %v232 = vadd.f32 %v228, %v230
    %v233 = vadd.f32 %v229, %v231
    %234 = vst [vmem:[#allocation10] sm:$0xf] %v224
    %235 = vst [vmem:[#allocation10 + $0x4] sm:$0xf] %v225
    %236 = vst [vmem:[#allocation11] sm:$0xf] %v232
    %237 = vst [vmem:[#allocation11 + $0x4] sm:$0xf] %v233
    // Predicated region
    $region34: #{tpu_custom_call.1} parent=1 // pred_check
      _
    $region35: #{tpu_custom_call.1} parent=1 // pred_check_branch
      %239 = sbr.rel (0) target = $region37
    $region36: #{tpu_custom_call.1} parent=1 // pred_region
      %s241 = ssub.s32 128, 128
      %242 = vsyncadd [#allocation4], %s241
      %s243 = sshll.u32 [#allocation10], 4
      %s244 = int_to_ptr.vmem [resolvable:$true] %s243
      %249 = dma.vmem_to_hbm [thread:$0]  %s244, 128, %s4, [#allocation4], 64, 64, 4
    $region37: #{tpu_custom_call.1} parent=1 // pred_fallthru
      _
    // Predicated region
    $region38: #{tpu_custom_call.1} parent=1 // pred_check
      _
    $region39: #{tpu_custom_call.1} parent=1 // pred_check_branch
      %251 = sbr.rel (0) target = $region41
    $region40: #{tpu_custom_call.1} parent=1 // pred_region
      %s253 = ssub.s32 128, 128
      %254 = vsyncadd [#allocation12], %s253
      %s255 = sshll.u32 [#allocation11], 4
      %s256 = int_to_ptr.vmem [resolvable:$true] %s255
      %261 = dma.vmem_to_hbm [thread:$0]  %s256, 128, %s5, [#allocation12], 64, 64, 4
    $region41: #{tpu_custom_call.1} parent=1 // pred_fallthru
      _
    // Predicated region
    $region42: #{tpu_custom_call.1} parent=1 // pred_check
      _
    $region43: #{tpu_custom_call.1} parent=1 // pred_check_branch
      %263 = sbr.rel (0) target = $region45
    $region44: #{tpu_custom_call.1} parent=1 // pred_region
      %264 = dma.done [#allocation4], 128
    $region45: #{tpu_custom_call.1} parent=1 // pred_fallthru
      _
    // Predicated region
    $region46: #{tpu_custom_call.1} parent=1 // pred_check
      _
    $region47: #{tpu_custom_call.1} parent=1 // pred_check_branch
      %266 = sbr.rel (0) target = $region49
    $region48: #{tpu_custom_call.1} parent=1 // pred_region
      %267 = dma.done [#allocation12], 128
    $region49: #{tpu_custom_call.1} parent=1 // pred_fallthru
      _
    %268 = vsyncpa [#allocation3], 1
    %269 = vsyncpa [#allocation6], 1
    %270 = vsyncpa [#allocation9], 1
    %271 = vsyncpa [#allocation4], 1
    %272 = vsyncpa [#allocation12], 1

</llo_original>
